<compile_context>
chip_gen: v5e
topology: v5e:2x2
jax: 0.10.0
libtpu: 0.0.40
codegen_flags: <defaults>
</compile_context>

<pallas_src>
import functools

import jax
import jax.numpy as jnp
from jax.experimental import pallas as pl
from jax.experimental.pallas import tpu as pltpu

_LANE = 128     # vreg lane width (last dim); use 256 on v6e/v7x for full MXU width
_SUBLANE = 8    # vreg sublane count (second-to-last dim)


def _round_up(x, m):
    return (x + m - 1) // m * m


def _pick_batch_tiling(batch, max_tile):
    """Pad batch to a multiple of 8 and pick a tile that divides it exactly.

    Shrinking the tile (instead of padding up to a full extra tile) avoids a
    whole tile of dead MXU work for unlucky batch sizes.  When the batch is
    large enough, prefer >=2 tiles so the "parallel" grid axis can shard across
    v7x's two TensorCores (free on single-TC v5e/v6e).
    """
    bp = _round_up(batch, _SUBLANE)
    tm = _SUBLANE
    for cand in range(_SUBLANE, min(bp, max_tile) + 1, _SUBLANE):
        if bp % cand == 0:
            tm = cand
    if bp // tm == 1 and bp >= 2 * _SUBLANE and (bp // 2) % _SUBLANE == 0:
        tm = bp // 2            # 2 tiles -> both TensorCores on v7x
    return bp, tm


def _fused_mlp_kernel(*refs, num_layers):
    """One batch tile through the whole MLP (activation stays in vregs/VMEM).

    refs layout: [x_ref, w0, b0, w1, b1, ..., w_{L-1}, b_{L-1}, o_ref]
      x_ref: (tm, Kp0)   f32 padded activations
      w_l  : (Kp_l, Np_l) bf16 padded weight (in, out layout -> y = x @ W)
      b_l  : (1, Np_l)    f32 padded bias
      o_ref: (tm, Np_{L-1}) f32 padded output tile (lane-dense, unmasked stores)
    """
    x_ref = refs[0]
    o_ref = refs[1 + 2 * num_layers]
    h = x_ref[...]                                     # f32
    for l in range(num_layers):                        # static unroll, L is small
        w_ref = refs[1 + 2 * l]
        b_ref = refs[2 + 2 * l]
        # bf16 operands on the MXU, f32 accumulate; bias+ReLU in f32 on the VPU.
        y = jnp.dot(h.astype(jnp.bfloat16), w_ref[...],
                    preferred_element_type=jnp.float32)
        y = y + b_ref[...]                             # (1, Np) broadcast over rows
        if l < num_layers - 1:
            y = jnp.maximum(y, 0.0)                    # ReLU on hidden layers only
        h = y
    o_ref[...] = h.astype(o_ref.dtype)


def fused_feedforward(x, packed_params, *, out_dim, batch_tile=512):
    """Fused MLP forward.  x: (B, in_dim) f32.  Returns (B, out_dim) f32."""
    B, in_dim = x.shape
    L = len(packed_params)
    kp0 = packed_params[0][0].shape[0]          # padded fan_in of layer 0
    np_last = packed_params[-1][0].shape[1]     # padded fan_out of last layer

    Bp, tm = _pick_batch_tiling(B, batch_tile)

    # Pad input only along features (to layer-0's padded fan_in) and minimally
    # along batch.  Padded feature columns stay zero through every layer because
    # padded weight rows/cols and padded bias entries are zero.
    xp = jnp.pad(x.astype(jnp.float32), ((0, Bp - B), (0, kp0 - in_dim)))

    flat_params = []
    for wp, bp in packed_params:
        flat_params += [wp, bp]

    # Explicit VMEM budget: resident weights/biases (assume worst-case 2 buffers)
    # + double-buffered in/out activation tiles + headroom; clamp to 64 MiB so it
    # is valid on every chip (v7x physical VMEM is 64 MiB per TensorCore).
    w_bytes = sum(int(wp.size) * wp.dtype.itemsize + int(bp.size) * bp.dtype.itemsize
                  for wp, bp in packed_params)
    act_bytes = (tm * kp0 + tm * np_last) * 4
    vmem_limit = min(64 << 20, max(32 << 20, 2 * w_bytes + 2 * act_bytes + (8 << 20)))

    # Advisory cost estimate so XLA schedules/overlaps the custom call correctly.
    cost = pl.CostEstimate(
        flops=int(sum(2 * Bp * wp.shape[0] * wp.shape[1] for wp, _ in packed_params)),
        transcendentals=0,
        bytes_accessed=int(xp.size * 4 + w_bytes + Bp * np_last * 4),
    )

    kernel = functools.partial(_fused_mlp_kernel, num_layers=L)

    def build_and_run(single_buffer_weights):
        # Weights/biases use a constant block index -> fetched once, resident in
        # VMEM across batch tiles; Buffered(1) keeps them single-buffered so the
        # resident stack is not doubled.
        extra = {"pipeline_mode": pl.Buffered(1)} if single_buffer_weights else {}
        in_specs = [pl.BlockSpec((tm, kp0), lambda i: (i, 0))]
        for wp, bp in packed_params:
            kp, npad = wp.shape
            in_specs.append(pl.BlockSpec((kp, npad), lambda i: (0, 0), **extra))
            in_specs.append(pl.BlockSpec((1, npad), lambda i: (0, 0), **extra))
        out = pl.pallas_call(
            kernel,
            out_shape=jax.ShapeDtypeStruct((Bp, np_last), jnp.float32),
            grid_spec=pl.GridSpec(
                grid=(Bp // tm,),
                in_specs=in_specs,
                out_specs=pl.BlockSpec((tm, np_last), lambda i: (i, 0)),
            ),
            compiler_params=pltpu.CompilerParams(
                dimension_semantics=("parallel",),     # batch tiles independent
                vmem_limit_bytes=vmem_limit,
            ),
            cost_estimate=cost,
        )(xp, *flat_params)
        return jax.block_until_ready(out)

    try:
        out_p = build_and_run(True)
    except Exception:
        # pl.Buffered(1) not supported by this jax/backend -> default buffering.
        out_p = build_and_run(False)

    return out_p[:B, :out_dim]


def init_feedforward_params(key, in_dim, hidden_dim, hidden_count, out_dim):
    """PyTorch nn.Linear default init (uniform +/- 1/sqrt(fan_in)).

    Returns a list of (W, b) with W already transposed to (in, out), f32.
    """
    dims = [in_dim] + [hidden_dim] * hidden_count + [out_dim]
    params = []
    for i in range(len(dims) - 1):
        fan_in, fan_out = dims[i], dims[i + 1]
        key, kw, kb = jax.random.split(key, 3)
        bound = 1.0 / jnp.sqrt(fan_in)
        w = jax.random.uniform(kw, (fan_in, fan_out), jnp.float32, -bound, bound)
        b = jax.random.uniform(kb, (fan_out,), jnp.float32, -bound, bound)
        params.append((w, b))
    return params


def pack_params(params, *, lane_multiple=_LANE):
    """Per-layer zero-padding to (round_up(fan_in, m), round_up(fan_out, m)).

    Weights are stored in bf16 (MXU-native, half the VMEM/HBM traffic); biases
    stay f32 for the VPU bias-add.  Use lane_multiple=256 on v6e/v7x when the
    hidden size warrants filling the 2x256x256 MXU.
    """
    packed = []
    for w, b in params:
        fi, fo = w.shape
        kp = _round_up(fi, lane_multiple)
        npad = _round_up(fo, lane_multiple)
        wp = jnp.zeros((kp, npad), jnp.bfloat16).at[:fi, :fo].set(w.astype(jnp.bfloat16))
        bp = jnp.zeros((1, npad), jnp.float32).at[0, :fo].set(b)
        packed.append((wp, bp))
    return packed


# TODO(synk): model save()/load (torch.save state_dict file I/O) has no Pallas equivalent; omitted.

if __name__ == "__main__":
    # Small shapes consistent with the module's forward.
    batch, in_dim, hidden_dim, hidden_count, out_dim = 8, 16, 32, 3, 4

    key = jax.random.PRNGKey(0)
    key, kx = jax.random.split(key)
    x = jax.random.normal(kx, (batch, in_dim), jnp.float32)

    params = init_feedforward_params(key, in_dim, hidden_dim, hidden_count, out_dim)
    packed = pack_params(params)

    out = fused_feedforward(x, packed, out_dim=out_dim)
    out = jax.block_until_ready(out)

    # Reference in plain JAX f32 on the unpadded params (same math as PyTorch).
    ref = x
    for i, (w, b) in enumerate(params):
        ref = jnp.dot(ref, w, preferred_element_type=jnp.float32) + b
        if i < len(params) - 1:
            ref = jnp.maximum(ref, 0.0)

    assert out.shape == (batch, out_dim)
    # bf16 MXU operands -> loosened tolerances vs the f32 reference.
    assert jnp.allclose(out, ref, atol=2e-2, rtol=2e-2)

    print("KERNEL_OK")
</pallas_src>

<mosaic_0001>
module attributes {stable_mosaic.version = 11 : i64} {
  func.func @_fused_mlp_kernel(%arg0: i32, %arg1: memref<8x128xf32, #tpu.memory_space<vmem>>, %arg2: memref<128x128xbf16, #tpu.memory_space<vmem>>, %arg3: memref<1x128xf32, #tpu.memory_space<vmem>>, %arg4: memref<128x128xbf16, #tpu.memory_space<vmem>>, %arg5: memref<1x128xf32, #tpu.memory_space<vmem>>, %arg6: memref<128x128xbf16, #tpu.memory_space<vmem>>, %arg7: memref<1x128xf32, #tpu.memory_space<vmem>>, %arg8: memref<128x128xbf16, #tpu.memory_space<vmem>>, %arg9: memref<1x128xf32, #tpu.memory_space<vmem>>, %arg10: memref<8x128xf32, #tpu.memory_space<vmem>>) attributes {dimension_semantics = [#tpu.dimension_semantics<parallel>], iteration_bounds = array<i64: 1>, scalar_prefetch = 0 : i64, scratch_operands = 0 : i64, tpu.core_type = #tpu.core_type<tc>, window_params = [{transform_indices = @transform_0, window_bounds = array<i64: 8, 128>}, {pipeline_mode = #tpu.pipeline_mode<synchronous>, transform_indices = @transform_1, window_bounds = array<i64: 128, 128>}, {pipeline_mode = #tpu.pipeline_mode<synchronous>, transform_indices = @transform_2, window_bounds = array<i64: 1, 128>}, {pipeline_mode = #tpu.pipeline_mode<synchronous>, transform_indices = @transform_3, window_bounds = array<i64: 128, 128>}, {pipeline_mode = #tpu.pipeline_mode<synchronous>, transform_indices = @transform_4, window_bounds = array<i64: 1, 128>}, {pipeline_mode = #tpu.pipeline_mode<synchronous>, transform_indices = @transform_5, window_bounds = array<i64: 128, 128>}, {pipeline_mode = #tpu.pipeline_mode<synchronous>, transform_indices = @transform_6, window_bounds = array<i64: 1, 128>}, {pipeline_mode = #tpu.pipeline_mode<synchronous>, transform_indices = @transform_7, window_bounds = array<i64: 128, 128>}, {pipeline_mode = #tpu.pipeline_mode<synchronous>, transform_indices = @transform_8, window_bounds = array<i64: 1, 128>}, {transform_indices = @transform_9, window_bounds = array<i64: 8, 128>}]} {
    %c0 = arith.constant 0 : index
    %c0_0 = arith.constant 0 : index
    %0 = vector.load %arg1[%c0, %c0_0] : memref<8x128xf32, #tpu.memory_space<vmem>>, vector<8x128xf32>
    %1 = arith.truncf %0 : vector<8x128xf32> to vector<8x128xbf16>
    %c0_1 = arith.constant 0 : index
    %c0_2 = arith.constant 0 : index
    %2 = vector.load %arg2[%c0_1, %c0_2] : memref<128x128xbf16, #tpu.memory_space<vmem>>, vector<128x128xbf16>
    %cst = arith.constant dense<0.000000e+00> : vector<8x128xf32>
    %3 = tpu.matmul %1, %2, %cst {dimension_numbers = #tpu.dot_dimension_numbers<[1], [0], [0], [1], [0, 0, 1, 1], [], []>} : vector<8x128xbf16>, vector<128x128xbf16>, vector<8x128xf32> -> vector<8x128xf32>
    %c0_3 = arith.constant 0 : index
    %c0_4 = arith.constant 0 : index
    %4 = vector.load %arg3[%c0_3, %c0_4] : memref<1x128xf32, #tpu.memory_space<vmem>>, vector<1x128xf32>
    %5 = vector.broadcast %4 : vector<1x128xf32> to vector<8x128xf32>
    %6 = arith.addf %3, %5 : vector<8x128xf32>
    %cst_5 = arith.constant 0.000000e+00 : f32
    %7 = vector.broadcast %cst_5 : f32 to vector<8x128xf32>
    %8 = arith.maximumf %6, %7 : vector<8x128xf32>
    %9 = arith.truncf %8 : vector<8x128xf32> to vector<8x128xbf16>
    %c0_6 = arith.constant 0 : index
    %c0_7 = arith.constant 0 : index
    %10 = vector.load %arg4[%c0_6, %c0_7] : memref<128x128xbf16, #tpu.memory_space<vmem>>, vector<128x128xbf16>
    %cst_8 = arith.constant dense<0.000000e+00> : vector<8x128xf32>
    %11 = tpu.matmul %9, %10, %cst_8 {dimension_numbers = #tpu.dot_dimension_numbers<[1], [0], [0], [1], [0, 0, 1, 1], [], []>} : vector<8x128xbf16>, vector<128x128xbf16>, vector<8x128xf32> -> vector<8x128xf32>
    %c0_9 = arith.constant 0 : index
    %c0_10 = arith.constant 0 : index
    %12 = vector.load %arg5[%c0_9, %c0_10] : memref<1x128xf32, #tpu.memory_space<vmem>>, vector<1x128xf32>
    %13 = vector.broadcast %12 : vector<1x128xf32> to vector<8x128xf32>
    %14 = arith.addf %11, %13 : vector<8x128xf32>
    %cst_11 = arith.constant 0.000000e+00 : f32
    %15 = vector.broadcast %cst_11 : f32 to vector<8x128xf32>
    %16 = arith.maximumf %14, %15 : vector<8x128xf32>
    %17 = arith.truncf %16 : vector<8x128xf32> to vector<8x128xbf16>
    %c0_12 = arith.constant 0 : index
    %c0_13 = arith.constant 0 : index
    %18 = vector.load %arg6[%c0_12, %c0_13] : memref<128x128xbf16, #tpu.memory_space<vmem>>, vector<128x128xbf16>
    %cst_14 = arith.constant dense<0.000000e+00> : vector<8x128xf32>
    %19 = tpu.matmul %17, %18, %cst_14 {dimension_numbers = #tpu.dot_dimension_numbers<[1], [0], [0], [1], [0, 0, 1, 1], [], []>} : vector<8x128xbf16>, vector<128x128xbf16>, vector<8x128xf32> -> vector<8x128xf32>
    %c0_15 = arith.constant 0 : index
    %c0_16 = arith.constant 0 : index
    %20 = vector.load %arg7[%c0_15, %c0_16] : memref<1x128xf32, #tpu.memory_space<vmem>>, vector<1x128xf32>
    %21 = vector.broadcast %20 : vector<1x128xf32> to vector<8x128xf32>
    %22 = arith.addf %19, %21 : vector<8x128xf32>
    %cst_17 = arith.constant 0.000000e+00 : f32
    %23 = vector.broadcast %cst_17 : f32 to vector<8x128xf32>
    %24 = arith.maximumf %22, %23 : vector<8x128xf32>
    %25 = arith.truncf %24 : vector<8x128xf32> to vector<8x128xbf16>
    %c0_18 = arith.constant 0 : index
    %c0_19 = arith.constant 0 : index
    %26 = vector.load %arg8[%c0_18, %c0_19] : memref<128x128xbf16, #tpu.memory_space<vmem>>, vector<128x128xbf16>
    %cst_20 = arith.constant dense<0.000000e+00> : vector<8x128xf32>
    %27 = tpu.matmul %25, %26, %cst_20 {dimension_numbers = #tpu.dot_dimension_numbers<[1], [0], [0], [1], [0, 0, 1, 1], [], []>} : vector<8x128xbf16>, vector<128x128xbf16>, vector<8x128xf32> -> vector<8x128xf32>
    %c0_21 = arith.constant 0 : index
    %c0_22 = arith.constant 0 : index
    %28 = vector.load %arg9[%c0_21, %c0_22] : memref<1x128xf32, #tpu.memory_space<vmem>>, vector<1x128xf32>
    %29 = vector.broadcast %28 : vector<1x128xf32> to vector<8x128xf32>
    %30 = arith.addf %27, %29 : vector<8x128xf32>
    %c0_23 = arith.constant 0 : index
    %c0_24 = arith.constant 0 : index
    %31 = vector.load %arg10[%c0_23, %c0_24] : memref<8x128xf32, #tpu.memory_space<vmem>>, vector<8x128xf32>
    tpu.vector_store %arg10[%c0_23, %c0_24], %30 {strides = array<i32>} : memref<8x128xf32, #tpu.memory_space<vmem>>, vector<8x128xf32>,
    return
  }
  func.func @transform_0(%arg0: i32) -> (i32, i32) {
    %c0_i32 = arith.constant 0 : i32
    %c0_i32_0 = arith.constant 0 : i32
    return %arg0, %c0_i32 : i32, i32
  }
  func.func @transform_1(%arg0: i32) -> (i32, i32) {
    %c0_i32 = arith.constant 0 : i32
    %c0_i32_0 = arith.constant 0 : i32
    %c0_i32_1 = arith.constant 0 : i32
    return %c0_i32, %c0_i32_0 : i32, i32
  }
  func.func @transform_2(%arg0: i32) -> (i32, i32) {
    %c0_i32 = arith.constant 0 : i32
    %c0_i32_0 = arith.constant 0 : i32
    %c0_i32_1 = arith.constant 0 : i32
    return %c0_i32, %c0_i32_0 : i32, i32
  }
  func.func @transform_3(%arg0: i32) -> (i32, i32) {
    %c0_i32 = arith.constant 0 : i32
    %c0_i32_0 = arith.constant 0 : i32
    %c0_i32_1 = arith.constant 0 : i32
    return %c0_i32, %c0_i32_0 : i32, i32
  }
  func.func @transform_4(%arg0: i32) -> (i32, i32) {
    %c0_i32 = arith.constant 0 : i32
    %c0_i32_0 = arith.constant 0 : i32
    %c0_i32_1 = arith.constant 0 : i32
    return %c0_i32, %c0_i32_0 : i32, i32
  }
  func.func @transform_5(%arg0: i32) -> (i32, i32) {
    %c0_i32 = arith.constant 0 : i32
    %c0_i32_0 = arith.constant 0 : i32
    %c0_i32_1 = arith.constant 0 : i32
    return %c0_i32, %c0_i32_0 : i32, i32
  }
  func.func @transform_6(%arg0: i32) -> (i32, i32) {
    %c0_i32 = arith.constant 0 : i32
    %c0_i32_0 = arith.constant 0 : i32
    %c0_i32_1 = arith.constant 0 : i32
    return %c0_i32, %c0_i32_0 : i32, i32
  }
  func.func @transform_7(%arg0: i32) -> (i32, i32) {
    %c0_i32 = arith.constant 0 : i32
    %c0_i32_0 = arith.constant 0 : i32
    %c0_i32_1 = arith.constant 0 : i32
    return %c0_i32, %c0_i32_0 : i32, i32
  }
  func.func @transform_8(%arg0: i32) -> (i32, i32) {
    %c0_i32 = arith.constant 0 : i32
    %c0_i32_0 = arith.constant 0 : i32
    %c0_i32_1 = arith.constant 0 : i32
    return %c0_i32, %c0_i32_0 : i32, i32
  }
  func.func @transform_9(%arg0: i32) -> (i32, i32) {
    %c0_i32 = arith.constant 0 : i32
    %c0_i32_0 = arith.constant 0 : i32
    return %arg0, %c0_i32 : i32, i32
  }
}

module attributes {stable_mosaic.version = 11 : i64} {
  func.func @_fused_mlp_kernel(%arg0: i32, %arg1: memref<8x128xf32, #tpu.memory_space<vmem>>, %arg2: memref<128x128xbf16, #tpu.memory_space<vmem>>, %arg3: memref<1x128xf32, #tpu.memory_space<vmem>>, %arg4: memref<128x128xbf16, #tpu.memory_space<vmem>>, %arg5: memref<1x128xf32, #tpu.memory_space<vmem>>, %arg6: memref<128x128xbf16, #tpu.memory_space<vmem>>, %arg7: memref<1x128xf32, #tpu.memory_space<vmem>>, %arg8: memref<128x128xbf16, #tpu.memory_space<vmem>>, %arg9: memref<1x128xf32, #tpu.memory_space<vmem>>, %arg10: memref<8x128xf32, #tpu.memory_space<vmem>>) attributes {dimension_semantics = [#tpu.dimension_semantics<parallel>], iteration_bounds = array<i64: 1>, scalar_prefetch = 0 : i64, scratch_operands = 0 : i64, tpu.core_type = #tpu.core_type<tc>, window_params = [{transform_indices = @transform_0, window_bounds = array<i64: 8, 128>}, {pipeline_mode = #tpu.pipeline_mode<synchronous>, transform_indices = @transform_1, window_bounds = array<i64: 128, 128>}, {pipeline_mode = #tpu.pipeline_mode<synchronous>, transform_indices = @transform_2, window_bounds = array<i64: 1, 128>}, {pipeline_mode = #tpu.pipeline_mode<synchronous>, transform_indices = @transform_3, window_bounds = array<i64: 128, 128>}, {pipeline_mode = #tpu.pipeline_mode<synchronous>, transform_indices = @transform_4, window_bounds = array<i64: 1, 128>}, {pipeline_mode = #tpu.pipeline_mode<synchronous>, transform_indices = @transform_5, window_bounds = array<i64: 128, 128>}, {pipeline_mode = #tpu.pipeline_mode<synchronous>, transform_indices = @transform_6, window_bounds = array<i64: 1, 128>}, {pipeline_mode = #tpu.pipeline_mode<synchronous>, transform_indices = @transform_7, window_bounds = array<i64: 128, 128>}, {pipeline_mode = #tpu.pipeline_mode<synchronous>, transform_indices = @transform_8, window_bounds = array<i64: 1, 128>}, {transform_indices = @transform_9, window_bounds = array<i64: 8, 128>}]} {
    %c0 = arith.constant 0 : index
    %c0_0 = arith.constant 0 : index
    %0 = vector.load %arg1[%c0, %c0_0] : memref<8x128xf32, #tpu.memory_space<vmem>>, vector<8x128xf32>
    %1 = arith.truncf %0 : vector<8x128xf32> to vector<8x128xbf16>
    %c0_1 = arith.constant 0 : index
    %c0_2 = arith.constant 0 : index
    %2 = vector.load %arg2[%c0_1, %c0_2] : memref<128x128xbf16, #tpu.memory_space<vmem>>, vector<128x128xbf16>
    %cst = arith.constant dense<0.000000e+00> : vector<8x128xf32>
    %3 = tpu.matmul %1, %2, %cst {dimension_numbers = #tpu.dot_dimension_numbers<[1], [0], [0], [1], [0, 0, 1, 1], [], []>} : vector<8x128xbf16>, vector<128x128xbf16>, vector<8x128xf32> -> vector<8x128xf32>
    %c0_3 = arith.constant 0 : index
    %c0_4 = arith.constant 0 : index
    %4 = vector.load %arg3[%c0_3, %c0_4] : memref<1x128xf32, #tpu.memory_space<vmem>>, vector<1x128xf32>
    %5 = vector.broadcast %4 : vector<1x128xf32> to vector<8x128xf32>
    %6 = arith.addf %3, %5 : vector<8x128xf32>
    %cst_5 = arith.constant 0.000000e+00 : f32
    %7 = vector.broadcast %cst_5 : f32 to vector<8x128xf32>
    %8 = arith.maximumf %6, %7 : vector<8x128xf32>
    %9 = arith.truncf %8 : vector<8x128xf32> to vector<8x128xbf16>
    %c0_6 = arith.constant 0 : index
    %c0_7 = arith.constant 0 : index
    %10 = vector.load %arg4[%c0_6, %c0_7] : memref<128x128xbf16, #tpu.memory_space<vmem>>, vector<128x128xbf16>
    %cst_8 = arith.constant dense<0.000000e+00> : vector<8x128xf32>
    %11 = tpu.matmul %9, %10, %cst_8 {dimension_numbers = #tpu.dot_dimension_numbers<[1], [0], [0], [1], [0, 0, 1, 1], [], []>} : vector<8x128xbf16>, vector<128x128xbf16>, vector<8x128xf32> -> vector<8x128xf32>
    %c0_9 = arith.constant 0 : index
    %c0_10 = arith.constant 0 : index
    %12 = vector.load %arg5[%c0_9, %c0_10] : memref<1x128xf32, #tpu.memory_space<vmem>>, vector<1x128xf32>
    %13 = vector.broadcast %12 : vector<1x128xf32> to vector<8x128xf32>
    %14 = arith.addf %11, %13 : vector<8x128xf32>
    %cst_11 = arith.constant 0.000000e+00 : f32
    %15 = vector.broadcast %cst_11 : f32 to vector<8x128xf32>
    %16 = arith.maximumf %14, %15 : vector<8x128xf32>
    %17 = arith.truncf %16 : vector<8x128xf32> to vector<8x128xbf16>
    %c0_12 = arith.constant 0 : index
    %c0_13 = arith.constant 0 : index
    %18 = vector.load %arg6[%c0_12, %c0_13] : memref<128x128xbf16, #tpu.memory_space<vmem>>, vector<128x128xbf16>
    %cst_14 = arith.constant dense<0.000000e+00> : vector<8x128xf32>
    %19 = tpu.matmul %17, %18, %cst_14 {dimension_numbers = #tpu.dot_dimension_numbers<[1], [0], [0], [1], [0, 0, 1, 1], [], []>} : vector<8x128xbf16>, vector<128x128xbf16>, vector<8x128xf32> -> vector<8x128xf32>
    %c0_15 = arith.constant 0 : index
    %c0_16 = arith.constant 0 : index
    %20 = vector.load %arg7[%c0_15, %c0_16] : memref<1x128xf32, #tpu.memory_space<vmem>>, vector<1x128xf32>
    %21 = vector.broadcast %20 : vector<1x128xf32> to vector<8x128xf32>
    %22 = arith.addf %19, %21 : vector<8x128xf32>
    %cst_17 = arith.constant 0.000000e+00 : f32
    %23 = vector.broadcast %cst_17 : f32 to vector<8x128xf32>
    %24 = arith.maximumf %22, %23 : vector<8x128xf32>
    %25 = arith.truncf %24 : vector<8x128xf32> to vector<8x128xbf16>
    %c0_18 = arith.constant 0 : index
    %c0_19 = arith.constant 0 : index
    %26 = vector.load %arg8[%c0_18, %c0_19] : memref<128x128xbf16, #tpu.memory_space<vmem>>, vector<128x128xbf16>
    %cst_20 = arith.constant dense<0.000000e+00> : vector<8x128xf32>
    %27 = tpu.matmul %25, %26, %cst_20 {dimension_numbers = #tpu.dot_dimension_numbers<[1], [0], [0], [1], [0, 0, 1, 1], [], []>} : vector<8x128xbf16>, vector<128x128xbf16>, vector<8x128xf32> -> vector<8x128xf32>
    %c0_21 = arith.constant 0 : index
    %c0_22 = arith.constant 0 : index
    %28 = vector.load %arg9[%c0_21, %c0_22] : memref<1x128xf32, #tpu.memory_space<vmem>>, vector<1x128xf32>
    %29 = vector.broadcast %28 : vector<1x128xf32> to vector<8x128xf32>
    %30 = arith.addf %27, %29 : vector<8x128xf32>
    %c0_23 = arith.constant 0 : index
    %c0_24 = arith.constant 0 : index
    %31 = vector.load %arg10[%c0_23, %c0_24] : memref<8x128xf32, #tpu.memory_space<vmem>>, vector<8x128xf32>
    tpu.vector_store %arg10[%c0_23, %c0_24], %30 {strides = array<i32>} : memref<8x128xf32, #tpu.memory_space<vmem>>, vector<8x128xf32>,
    return
  }
  func.func @transform_0(%arg0: i32) -> (i32, i32) {
    %c0_i32 = arith.constant 0 : i32
    %c0_i32_0 = arith.constant 0 : i32
    return %arg0, %c0_i32 : i32, i32
  }
  func.func @transform_1(%arg0: i32) -> (i32, i32) {
    %c0_i32 = arith.constant 0 : i32
    %c0_i32_0 = arith.constant 0 : i32
    %c0_i32_1 = arith.constant 0 : i32
    return %c0_i32, %c0_i32_0 : i32, i32
  }
  func.func @transform_2(%arg0: i32) -> (i32, i32) {
    %c0_i32 = arith.constant 0 : i32
    %c0_i32_0 = arith.constant 0 : i32
    %c0_i32_1 = arith.constant 0 : i32
    return %c0_i32, %c0_i32_0 : i32, i32
  }
  func.func @transform_3(%arg0: i32) -> (i32, i32) {
    %c0_i32 = arith.constant 0 : i32
    %c0_i32_0 = arith.constant 0 : i32
    %c0_i32_1 = arith.constant 0 : i32
    return %c0_i32, %c0_i32_0 : i32, i32
  }
  func.func @transform_4(%arg0: i32) -> (i32, i32) {
    %c0_i32 = arith.constant 0 : i32
    %c0_i32_0 = arith.constant 0 : i32
    %c0_i32_1 = arith.constant 0 : i32
    return %c0_i32, %c0_i32_0 : i32, i32
  }
  func.func @transform_5(%arg0: i32) -> (i32, i32) {
    %c0_i32 = arith.constant 0 : i32
    %c0_i32_0 = arith.constant 0 : i32
    %c0_i32_1 = arith.constant 0 : i32
    return %c0_i32, %c0_i32_0 : i32, i32
  }
  func.func @transform_6(%arg0: i32) -> (i32, i32) {
    %c0_i32 = arith.constant 0 : i32
    %c0_i32_0 = arith.constant 0 : i32
    %c0_i32_1 = arith.constant 0 : i32
    return %c0_i32, %c0_i32_0 : i32, i32
  }
  func.func @transform_7(%arg0: i32) -> (i32, i32) {
    %c0_i32 = arith.constant 0 : i32
    %c0_i32_0 = arith.constant 0 : i32
    %c0_i32_1 = arith.constant 0 : i32
    return %c0_i32, %c0_i32_0 : i32, i32
  }
  func.func @transform_8(%arg0: i32) -> (i32, i32) {
    %c0_i32 = arith.constant 0 : i32
    %c0_i32_0 = arith.constant 0 : i32
    %c0_i32_1 = arith.constant 0 : i32
    return %c0_i32, %c0_i32_0 : i32, i32
  }
  func.func @transform_9(%arg0: i32) -> (i32, i32) {
    %c0_i32 = arith.constant 0 : i32
    %c0_i32_0 = arith.constant 0 : i32
    return %arg0, %c0_i32 : i32, i32
  }
}

</mosaic_0001>

<llo_original>
// kernel: tpu_custom_call.1
$region0: #{tpu_custom_call.1}
  #allocation0 [shape = 'u32[]', space=smem, size = 0x4, offset = 0x4, fixed_abs, tag = 'smem constant byte address 0x4 - core index']
  #allocation1 [shape = 'u32[72,128]{1,0:T(1,128)}', space=vmem, size = 0x9000, scoped, tag = 'internal scratch']
  %s0 = inlined_call_operand.hbm [shape: f32[8,128], index: 0, kind: input, shape index: {}]
  %s1 = inlined_call_operand.hbm [shape: bf16[128,128], index: 1, kind: input, shape index: {}]
  %s2 = inlined_call_operand.vmem [shape: f32[1,128], index: 2, kind: input, shape index: {}]
  %s3 = inlined_call_operand.hbm [shape: bf16[128,128], index: 3, kind: input, shape index: {}]
  %s4 = inlined_call_operand.vmem [shape: f32[1,128], index: 4, kind: input, shape index: {}]
  %s5 = inlined_call_operand.hbm [shape: bf16[128,128], index: 5, kind: input, shape index: {}]
  %s6 = inlined_call_operand.vmem [shape: f32[1,128], index: 6, kind: input, shape index: {}]
  %s7 = inlined_call_operand.hbm [shape: bf16[128,128], index: 7, kind: input, shape index: {}]
  %s8 = inlined_call_operand.vmem [shape: f32[1,128], index: 8, kind: input, shape index: {}]
  %s9 = inlined_call_operand.hbm [shape: f32[8,128], index: 9, kind: output, shape index: {}]
  %s10 = sld [smem:[#allocation0]]
  $region66: #{tpu_custom_call.1} parent=0
    _
  %s12 = ssub.s32 1, %s10
  %s13 = scalar_select 0, %s12, %s10
  $region1: #{tpu_custom_call.1} parent=0
    #allocation2 [shape = 'u8[4096]{0}', space=vmem, size = 0x1000, scoped, tag = 'input window, operand 0, single buffered']
    #allocation3 [shape = 's32[1]{0}', space=sflag, size = 0x4, scoped, tag = 'scoped memory for tpu_custom_call.1']
    #allocation4 [shape = 's32[1]{0}', space=sflag, size = 0x4, scoped, tag = 'scoped memory for tpu_custom_call.1']
    #allocation5 [shape = 'u8[32768]{0}', space=vmem, size = 0x8000, scoped, tag = 'input window, operand 1, single buffered']
    #allocation6 [shape = 's32[1]{0}', space=sflag, size = 0x4, scoped, tag = 'scoped memory for tpu_custom_call.1']
    #allocation7 [shape = 'u8[32768]{0}', space=vmem, size = 0x8000, scoped, tag = 'input window, operand 3, single buffered']
    #allocation8 [shape = 'u8[32768]{0}', space=vmem, size = 0x8000, scoped, tag = 'input window, operand 5, single buffered']
    #allocation9 [shape = 's32[1]{0}', space=sflag, size = 0x4, scoped, tag = 'scoped memory for tpu_custom_call.1']
    #allocation10 [shape = 'u8[32768]{0}', space=vmem, size = 0x8000, scoped, tag = 'input window, operand 7, single buffered']
    #allocation11 [shape = 'u8[4096]{0}', space=vmem, size = 0x1000, scoped, tag = 'output window, operand 0, single buffered']
    %14 = vsyncpa [#allocation3], 0
    %15 = vsyncpa [#allocation6], 0
    %16 = vsyncpa [#allocation9], 0
    %17 = vsyncpa [#allocation4], 0
    // Predicated region
    $region2: #{tpu_custom_call.1} parent=1 // pred_check
      _
    $region3: #{tpu_custom_call.1} parent=1 // pred_check_branch
      %19 = sbr.rel (0) target = $region5
    $region4: #{tpu_custom_call.1} parent=1 // pred_region
      %21 = vsyncadd [#allocation3], 0
      %s23 = sshll.u32 %s0, 4
      %s24 = int_to_ptr.hbm [resolvable:$true] %s23
      %s25 = sshll.u32 [#allocation2], 4
      %s26 = int_to_ptr.vmem [resolvable:$true] %s25
      %28 = dma.hbm_to_vmem [thread:$0]  %s24, 128, %s26, [#allocation3]
    $region5: #{tpu_custom_call.1} parent=1 // pred_fallthru
      _
    // Predicated region
    $region6: #{tpu_custom_call.1} parent=1 // pred_check
      _
    $region7: #{tpu_custom_call.1} parent=1 // pred_check_branch
      %30 = sbr.rel (0) target = $region9
    $region8: #{tpu_custom_call.1} parent=1 // pred_region
      %32 = vsyncadd [#allocation6], 0
      %s33 = sshll.u32 %s1, 4
      %s34 = int_to_ptr.hbm [resolvable:$true] %s33
      %s35 = sshll.u32 [#allocation5], 4
      %s36 = int_to_ptr.vmem [resolvable:$true] %s35
      %41 = dma.hbm_to_vmem [thread:$0]  %s34, 1024, %s36, [#allocation6], 64, 64, 4
    $region9: #{tpu_custom_call.1} parent=1 // pred_fallthru
      _
    // Predicated region
    $region10: #{tpu_custom_call.1} parent=1 // pred_check
      _
    $region11: #{tpu_custom_call.1} parent=1 // pred_check_branch
      %43 = sbr.rel (0) target = $region13
    $region12: #{tpu_custom_call.1} parent=1 // pred_region
      _
    $region13: #{tpu_custom_call.1} parent=1 // pred_fallthru
      _
    // Predicated region
    $region14: #{tpu_custom_call.1} parent=1 // pred_check
      _
    $region15: #{tpu_custom_call.1} parent=1 // pred_check_branch
      %45 = sbr.rel (0) target = $region17
    $region16: #{tpu_custom_call.1} parent=1 // pred_region
      %47 = vsyncadd [#allocation6], 0
      %s48 = sshll.u32 %s3, 4
      %s49 = int_to_ptr.hbm [resolvable:$true] %s48
      %s50 = sshll.u32 [#allocation7], 4
      %s51 = int_to_ptr.vmem [resolvable:$true] %s50
      %56 = dma.hbm_to_vmem [thread:$0]  %s49, 1024, %s51, [#allocation6], 64, 64, 4
    $region17: #{tpu_custom_call.1} parent=1 // pred_fallthru
      _
    // Predicated region
    $region18: #{tpu_custom_call.1} parent=1 // pred_check
      _
    $region19: #{tpu_custom_call.1} parent=1 // pred_check_branch
      %58 = sbr.rel (0) target = $region21
    $region20: #{tpu_custom_call.1} parent=1 // pred_region
      _
    $region21: #{tpu_custom_call.1} parent=1 // pred_fallthru
      _
    // Predicated region
    $region22: #{tpu_custom_call.1} parent=1 // pred_check
      _
    $region23: #{tpu_custom_call.1} parent=1 // pred_check_branch
      %60 = sbr.rel (0) target = $region25
    $region24: #{tpu_custom_call.1} parent=1 // pred_region
      %62 = vsyncadd [#allocation9], 0
      %s63 = sshll.u32 %s5, 4
      %s64 = int_to_ptr.hbm [resolvable:$true] %s63
      %s65 = sshll.u32 [#allocation8], 4
      %s66 = int_to_ptr.vmem [resolvable:$true] %s65
      %71 = dma.hbm_to_vmem [thread:$0]  %s64, 1024, %s66, [#allocation9], 64, 64, 4
    $region25: #{tpu_custom_call.1} parent=1 // pred_fallthru
      _
    // Predicated region
    $region26: #{tpu_custom_call.1} parent=1 // pred_check
      _
    $region27: #{tpu_custom_call.1} parent=1 // pred_check_branch
      %73 = sbr.rel (0) target = $region29
    $region28: #{tpu_custom_call.1} parent=1 // pred_region
      _
    $region29: #{tpu_custom_call.1} parent=1 // pred_fallthru
      _
    // Predicated region
    $region30: #{tpu_custom_call.1} parent=1 // pred_check
      _
    $region31: #{tpu_custom_call.1} parent=1 // pred_check_branch
      %75 = sbr.rel (0) target = $region33
    $region32: #{tpu_custom_call.1} parent=1 // pred_region
      %77 = vsyncadd [#allocation9], 0
      %s78 = sshll.u32 %s7, 4
      %s79 = int_to_ptr.hbm [resolvable:$true] %s78
      %s80 = sshll.u32 [#allocation10], 4
      %s81 = int_to_ptr.vmem [resolvable:$true] %s80
      %86 = dma.hbm_to_vmem [thread:$0]  %s79, 1024, %s81, [#allocation9], 64, 64, 4
    $region33: #{tpu_custom_call.1} parent=1 // pred_fallthru
      _
    // Predicated region
    $region34: #{tpu_custom_call.1} parent=1 // pred_check
      _
    $region35: #{tpu_custom_call.1} parent=1 // pred_check_branch
      %88 = sbr.rel (0) target = $region37
    $region36: #{tpu_custom_call.1} parent=1 // pred_region
      _
    $region37: #{tpu_custom_call.1} parent=1 // pred_fallthru
      _
    // Predicated region
    $region38: #{tpu_custom_call.1} parent=1 // pred_check
      _
    $region39: #{tpu_custom_call.1} parent=1 // pred_check_branch
      %90 = sbr.rel (0) target = $region41
    $region40: #{tpu_custom_call.1} parent=1 // pred_region
      %92 = dma.done [#allocation3], 128
    $region41: #{tpu_custom_call.1} parent=1 // pred_fallthru
      _
    // Predicated region
    $region42: #{tpu_custom_call.1} parent=1 // pred_check
      _
    $region43: #{tpu_custom_call.1} parent=1 // pred_check_branch
      %94 = sbr.rel (0) target = $region45
    $region44: #{tpu_custom_call.1} parent=1 // pred_region
      %96 = dma.done [#allocation6], 1024
    $region45: #{tpu_custom_call.1} parent=1 // pred_fallthru
      _
    // Predicated region
    $region46: #{tpu_custom_call.1} parent=1 // pred_check
      _
    $region47: #{tpu_custom_call.1} parent=1 // pred_check_branch
      %98 = sbr.rel (0) target = $region49
    $region48: #{tpu_custom_call.1} parent=1 // pred_region
      %100 = dma.done [#allocation6], 1024
    $region49: #{tpu_custom_call.1} parent=1 // pred_fallthru
      _
    // Predicated region
    $region50: #{tpu_custom_call.1} parent=1 // pred_check
      _
    $region51: #{tpu_custom_call.1} parent=1 // pred_check_branch
      %102 = sbr.rel (0) target = $region53
    $region52: #{tpu_custom_call.1} parent=1 // pred_region
      %104 = dma.done [#allocation9], 1024
    $region53: #{tpu_custom_call.1} parent=1 // pred_fallthru
      _
    // Predicated region
    $region54: #{tpu_custom_call.1} parent=1 // pred_check
      _
    $region55: #{tpu_custom_call.1} parent=1 // pred_check_branch
      %106 = sbr.rel (0) target = $region57
    $region56: #{tpu_custom_call.1} parent=1 // pred_region
      %108 = dma.done [#allocation9], 1024
    $region57: #{tpu_custom_call.1} parent=1 // pred_fallthru
      _
    %v109 = vld [vmem:[#allocation2] sm:$0xff]
    %v110 = vpack.c.bf16 %v109, %v109
    %v111 = vld [vmem:[#allocation5] sm:$0xf]
    %v112 = vld [vmem:[#allocation5 + $0x4] sm:$0xf]
    %v113 = vld [vmem:[#allocation5 + $0x8] sm:$0xf]
    %v114 = vld [vmem:[#allocation5 + $0xc] sm:$0xf]
    %v115 = vld [vmem:[#allocation5 + $0x10] sm:$0xf]
    %v116 = vld [vmem:[#allocation5 + $0x14] sm:$0xf]
    %v117 = vld [vmem:[#allocation5 + $0x18] sm:$0xf]
    %v118 = vld [vmem:[#allocation5 + $0x1c] sm:$0xf]
    %v119 = vld [vmem:[#allocation5 + $0x20] sm:$0xf]
    %v120 = vld [vmem:[#allocation5 + $0x24] sm:$0xf]
    %v121 = vld [vmem:[#allocation5 + $0x28] sm:$0xf]
    %v122 = vld [vmem:[#allocation5 + $0x2c] sm:$0xf]
    %v123 = vld [vmem:[#allocation5 + $0x30] sm:$0xf]
    %v124 = vld [vmem:[#allocation5 + $0x34] sm:$0xf]
    %v125 = vld [vmem:[#allocation5 + $0x38] sm:$0xf]
    %v126 = vld [vmem:[#allocation5 + $0x3c] sm:$0xf]
    %v127 = vld [vmem:[%s2] sm:$0x1]
    %v129 = vperm.slane %v127, 0
    %v147 = vunpack.c.l.b16 %v111
    %v148 = vunpack.c.l.b16 %v112
    %v149 = vunpack.c.l.b16 %v113
    %v150 = vunpack.c.l.b16 %v114
    %v151 = vunpack.c.l.b16 %v115
    %v152 = vunpack.c.l.b16 %v116
    %v153 = vunpack.c.l.b16 %v117
    %v154 = vunpack.c.l.b16 %v118
    %v155 = vunpack.c.l.b16 %v119
    %v156 = vunpack.c.l.b16 %v120
    %v157 = vunpack.c.l.b16 %v121
    %v158 = vunpack.c.l.b16 %v122
    %v159 = vunpack.c.l.b16 %v123
    %v160 = vunpack.c.l.b16 %v124
    %v161 = vunpack.c.l.b16 %v125
    %v162 = vunpack.c.l.b16 %v126
    %v163 = vpack.c.b16 %v148, %v147
    %v164 = vpack.c.b16 %v150, %v149
    %v165 = vpack.c.b16 %v152, %v151
    %v166 = vpack.c.b16 %v154, %v153
    %v167 = vpack.c.b16 %v156, %v155
    %v168 = vpack.c.b16 %v158, %v157
    %v169 = vpack.c.b16 %v160, %v159
    %v170 = vpack.c.b16 %v162, %v161
    %179 = vmatpush.bf16.msra.mxu0 %v170
    %180 = vmatpush.bf16.msra.mxu0 %v169
    %181 = vmatpush.bf16.msra.mxu0 %v168
    %182 = vmatpush.bf16.msra.mxu0 %v167
    %183 = vmatpush.bf16.msra.mxu0 %v166
    %184 = vmatpush.bf16.msra.mxu0 %v165
    %185 = vmatpush.bf16.msra.mxu0 %v164
    %186 = vmatpush.bf16.msra.mxu0 %v163
    %187 = vmatmul.bf16.gmra.mxu0 %v110
    %v188 = vpop.f32.mrf.mxu0
    %v189 = vadd.f32 %v129, %v188
    %v190 = vpop.f32.mrf.mxu0
    %191 = vdwg.mxu0
    %v192 = vmax.f32 %v189, 0.0
    %v193 = vpack.c.bf16 %v192, %v192
    %v194 = vld [vmem:[#allocation7] sm:$0xf]
    %v195 = vld [vmem:[#allocation7 + $0x4] sm:$0xf]
    %v196 = vld [vmem:[#allocation7 + $0x8] sm:$0xf]
    %v197 = vld [vmem:[#allocation7 + $0xc] sm:$0xf]
    %v198 = vld [vmem:[#allocation7 + $0x10] sm:$0xf]
    %v199 = vld [vmem:[#allocation7 + $0x14] sm:$0xf]
    %v200 = vld [vmem:[#allocation7 + $0x18] sm:$0xf]
    %v201 = vld [vmem:[#allocation7 + $0x1c] sm:$0xf]
    %v202 = vld [vmem:[#allocation7 + $0x20] sm:$0xf]
    %v203 = vld [vmem:[#allocation7 + $0x24] sm:$0xf]
    %v204 = vld [vmem:[#allocation7 + $0x28] sm:$0xf]
    %v205 = vld [vmem:[#allocation7 + $0x2c] sm:$0xf]
    %v206 = vld [vmem:[#allocation7 + $0x30] sm:$0xf]
    %v207 = vld [vmem:[#allocation7 + $0x34] sm:$0xf]
    %v208 = vld [vmem:[#allocation7 + $0x38] sm:$0xf]
    %v209 = vld [vmem:[#allocation7 + $0x3c] sm:$0xf]
    %v210 = vld [vmem:[%s4] sm:$0x1]
    %v212 = vperm.slane %v210, 0
    %v230 = vunpack.c.l.b16 %v194
    %v231 = vunpack.c.l.b16 %v195
    %v232 = vunpack.c.l.b16 %v196
    %v233 = vunpack.c.l.b16 %v197
    %v234 = vunpack.c.l.b16 %v198
    %v235 = vunpack.c.l.b16 %v199
    %v236 = vunpack.c.l.b16 %v200
    %v237 = vunpack.c.l.b16 %v201
    %v238 = vunpack.c.l.b16 %v202
    %v239 = vunpack.c.l.b16 %v203
    %v240 = vunpack.c.l.b16 %v204
    %v241 = vunpack.c.l.b16 %v205
    %v242 = vunpack.c.l.b16 %v206
    %v243 = vunpack.c.l.b16 %v207
    %v244 = vunpack.c.l.b16 %v208
    %v245 = vunpack.c.l.b16 %v209
    %v246 = vpack.c.b16 %v231, %v230
    %v247 = vpack.c.b16 %v233, %v232
    %v248 = vpack.c.b16 %v235, %v234
    %v249 = vpack.c.b16 %v237, %v236
    %v250 = vpack.c.b16 %v239, %v238
    %v251 = vpack.c.b16 %v241, %v240
    %v252 = vpack.c.b16 %v243, %v242
    %v253 = vpack.c.b16 %v245, %v244
    %262 = vmatpush.bf16.msra.mxu0 %v253
    %263 = vmatpush.bf16.msra.mxu0 %v252
    %264 = vmatpush.bf16.msra.mxu0 %v251
    %265 = vmatpush.bf16.msra.mxu0 %v250
    %266 = vmatpush.bf16.msra.mxu0 %v249
    %267 = vmatpush.bf16.msra.mxu0 %v248
    %268 = vmatpush.bf16.msra.mxu0 %v247
    %269 = vmatpush.bf16.msra.mxu0 %v246
    %270 = vmatmul.bf16.gmra.mxu0 %v193
    %v271 = vpop.f32.mrf.mxu0
    %v272 = vadd.f32 %v212, %v271
    %v273 = vpop.f32.mrf.mxu0
    %274 = vdwg.mxu0
    %v275 = vmax.f32 %v272, 0.0
    %v276 = vpack.c.bf16 %v275, %v275
    %v277 = vld [vmem:[#allocation8] sm:$0xf]
    %v278 = vld [vmem:[#allocation8 + $0x4] sm:$0xf]
    %v279 = vld [vmem:[#allocation8 + $0x8] sm:$0xf]
    %v280 = vld [vmem:[#allocation8 + $0xc] sm:$0xf]
    %v281 = vld [vmem:[#allocation8 + $0x10] sm:$0xf]
    %v282 = vld [vmem:[#allocation8 + $0x14] sm:$0xf]
    %v283 = vld [vmem:[#allocation8 + $0x18] sm:$0xf]
    %v284 = vld [vmem:[#allocation8 + $0x1c] sm:$0xf]
    %v285 = vld [vmem:[#allocation8 + $0x20] sm:$0xf]
    %v286 = vld [vmem:[#allocation8 + $0x24] sm:$0xf]
    %v287 = vld [vmem:[#allocation8 + $0x28] sm:$0xf]
    %v288 = vld [vmem:[#allocation8 + $0x2c] sm:$0xf]
    %v289 = vld [vmem:[#allocation8 + $0x30] sm:$0xf]
    %v290 = vld [vmem:[#allocation8 + $0x34] sm:$0xf]
    %v291 = vld [vmem:[#allocation8 + $0x38] sm:$0xf]
    %v292 = vld [vmem:[#allocation8 + $0x3c] sm:$0xf]
    %v293 = vld [vmem:[%s6] sm:$0x1]
    %v295 = vperm.slane %v293, 0
    %v313 = vunpack.c.l.b16 %v277
    %v314 = vunpack.c.l.b16 %v278
    %v315 = vunpack.c.l.b16 %v279
    %v316 = vunpack.c.l.b16 %v280
    %v317 = vunpack.c.l.b16 %v281
    %v318 = vunpack.c.l.b16 %v282
    %v319 = vunpack.c.l.b16 %v283
    %v320 = vunpack.c.l.b16 %v284
    %v321 = vunpack.c.l.b16 %v285
    %v322 = vunpack.c.l.b16 %v286
    %v323 = vunpack.c.l.b16 %v287
    %v324 = vunpack.c.l.b16 %v288
    %v325 = vunpack.c.l.b16 %v289
    %v326 = vunpack.c.l.b16 %v290
    %v327 = vunpack.c.l.b16 %v291
    %v328 = vunpack.c.l.b16 %v292
    %v329 = vpack.c.b16 %v314, %v313
    %v330 = vpack.c.b16 %v316, %v315
    %v331 = vpack.c.b16 %v318, %v317
    %v332 = vpack.c.b16 %v320, %v319
    %v333 = vpack.c.b16 %v322, %v321
    %v334 = vpack.c.b16 %v324, %v323
    %v335 = vpack.c.b16 %v326, %v325
    %v336 = vpack.c.b16 %v328, %v327
    %345 = vmatpush.bf16.msra.mxu0 %v336
    %346 = vmatpush.bf16.msra.mxu0 %v335
    %347 = vmatpush.bf16.msra.mxu0 %v334
    %348 = vmatpush.bf16.msra.mxu0 %v333
    %349 = vmatpush.bf16.msra.mxu0 %v332
    %350 = vmatpush.bf16.msra.mxu0 %v331
    %351 = vmatpush.bf16.msra.mxu0 %v330
    %352 = vmatpush.bf16.msra.mxu0 %v329
    %353 = vmatmul.bf16.gmra.mxu0 %v276
    %v354 = vpop.f32.mrf.mxu0
    %v355 = vadd.f32 %v295, %v354
    %v356 = vpop.f32.mrf.mxu0
    %357 = vdwg.mxu0
    %v358 = vmax.f32 %v355, 0.0
    %v359 = vpack.c.bf16 %v358, %v358
    %v360 = vld [vmem:[#allocation10] sm:$0xf]
    %v361 = vld [vmem:[#allocation10 + $0x4] sm:$0xf]
    %v362 = vld [vmem:[#allocation10 + $0x8] sm:$0xf]
    %v363 = vld [vmem:[#allocation10 + $0xc] sm:$0xf]
    %v364 = vld [vmem:[#allocation10 + $0x10] sm:$0xf]
    %v365 = vld [vmem:[#allocation10 + $0x14] sm:$0xf]
    %v366 = vld [vmem:[#allocation10 + $0x18] sm:$0xf]
    %v367 = vld [vmem:[#allocation10 + $0x1c] sm:$0xf]
    %v368 = vld [vmem:[#allocation10 + $0x20] sm:$0xf]
    %v369 = vld [vmem:[#allocation10 + $0x24] sm:$0xf]
    %v370 = vld [vmem:[#allocation10 + $0x28] sm:$0xf]
    %v371 = vld [vmem:[#allocation10 + $0x2c] sm:$0xf]
    %v372 = vld [vmem:[#allocation10 + $0x30] sm:$0xf]
    %v373 = vld [vmem:[#allocation10 + $0x34] sm:$0xf]
    %v374 = vld [vmem:[#allocation10 + $0x38] sm:$0xf]
    %v375 = vld [vmem:[#allocation10 + $0x3c] sm:$0xf]
    %v376 = vld [vmem:[%s8] sm:$0x1]
    %v378 = vperm.slane %v376, 0
    %v396 = vunpack.c.l.b16 %v360
    %v397 = vunpack.c.l.b16 %v361
    %v398 = vunpack.c.l.b16 %v362
    %v399 = vunpack.c.l.b16 %v363
    %v400 = vunpack.c.l.b16 %v364
    %v401 = vunpack.c.l.b16 %v365
    %v402 = vunpack.c.l.b16 %v366
    %v403 = vunpack.c.l.b16 %v367
    %v404 = vunpack.c.l.b16 %v368
    %v405 = vunpack.c.l.b16 %v369
    %v406 = vunpack.c.l.b16 %v370
    %v407 = vunpack.c.l.b16 %v371
    %v408 = vunpack.c.l.b16 %v372
    %v409 = vunpack.c.l.b16 %v373
    %v410 = vunpack.c.l.b16 %v374
    %v411 = vunpack.c.l.b16 %v375
    %v412 = vpack.c.b16 %v397, %v396
    %v413 = vpack.c.b16 %v399, %v398
    %v414 = vpack.c.b16 %v401, %v400
    %v415 = vpack.c.b16 %v403, %v402
    %v416 = vpack.c.b16 %v405, %v404
    %v417 = vpack.c.b16 %v407, %v406
    %v418 = vpack.c.b16 %v409, %v408
    %v419 = vpack.c.b16 %v411, %v410
    %428 = vmatpush.bf16.msra.mxu0 %v419
    %429 = vmatpush.bf16.msra.mxu0 %v418
    %430 = vmatpush.bf16.msra.mxu0 %v417
    %431 = vmatpush.bf16.msra.mxu0 %v416
    %432 = vmatpush.bf16.msra.mxu0 %v415
    %433 = vmatpush.bf16.msra.mxu0 %v414
    %434 = vmatpush.bf16.msra.mxu0 %v413
    %435 = vmatpush.bf16.msra.mxu0 %v412
    %436 = vmatmul.bf16.gmra.mxu0 %v359
    %v437 = vpop.f32.mrf.mxu0
    %v438 = vadd.f32 %v378, %v437
    %v439 = vpop.f32.mrf.mxu0
    %440 = vdwg.mxu0
    %441 = vst [vmem:[#allocation11] sm:$0xff] %v438
    // Predicated region
    $region58: #{tpu_custom_call.1} parent=1 // pred_check
      _
    $region59: #{tpu_custom_call.1} parent=1 // pred_check_branch
      %443 = sbr.rel (0) target = $region61
    $region60: #{tpu_custom_call.1} parent=1 // pred_region
      %445 = vsyncadd [#allocation4], 0
      %s447 = sshll.u32 [#allocation11], 4
      %s448 = int_to_ptr.vmem [resolvable:$true] %s447
      %s449 = sshll.u32 %s9, 4
      %s450 = int_to_ptr.hbm [resolvable:$true] %s449
      %452 = dma.vmem_to_hbm [thread:$0]  %s448, 128, %s450, [#allocation4]
    $region61: #{tpu_custom_call.1} parent=1 // pred_fallthru
      _
    // Predicated region
    $region62: #{tpu_custom_call.1} parent=1 // pred_check
      _
    $region63: #{tpu_custom_call.1} parent=1 // pred_check_branch
      %454 = sbr.rel (0) target = $region65
    $region64: #{tpu_custom_call.1} parent=1 // pred_region
      %456 = dma.done [#allocation4], 128
    $region65: #{tpu_custom_call.1} parent=1 // pred_fallthru
      _
    %457 = vsyncpa [#allocation3], 1
    %458 = vsyncpa [#allocation6], 1
    %459 = vsyncpa [#allocation9], 1
    %460 = vsyncpa [#allocation4], 1

// kernel: tpu_custom_call.1
$region0: #{tpu_custom_call.1}
  #allocation0 [shape = 'u32[]', space=smem, size = 0x4, offset = 0x4, fixed_abs, tag = 'smem constant byte address 0x4 - core index']
  #allocation1 [shape = 'u32[72,128]{1,0:T(1,128)}', space=vmem, size = 0x9000, scoped, tag = 'internal scratch']
  %s0 = inlined_call_operand.hbm [shape: f32[8,128], index: 0, kind: input, shape index: {}]
  %s1 = inlined_call_operand.hbm [shape: bf16[128,128], index: 1, kind: input, shape index: {}]
  %s2 = inlined_call_operand.vmem [shape: f32[1,128], index: 2, kind: input, shape index: {}]
  %s3 = inlined_call_operand.hbm [shape: bf16[128,128], index: 3, kind: input, shape index: {}]
  %s4 = inlined_call_operand.vmem [shape: f32[1,128], index: 4, kind: input, shape index: {}]
  %s5 = inlined_call_operand.hbm [shape: bf16[128,128], index: 5, kind: input, shape index: {}]
  %s6 = inlined_call_operand.vmem [shape: f32[1,128], index: 6, kind: input, shape index: {}]
  %s7 = inlined_call_operand.hbm [shape: bf16[128,128], index: 7, kind: input, shape index: {}]
  %s8 = inlined_call_operand.vmem [shape: f32[1,128], index: 8, kind: input, shape index: {}]
  %s9 = inlined_call_operand.hbm [shape: f32[8,128], index: 9, kind: output, shape index: {}]
  %s10 = sld [smem:[#allocation0]]
  $region66: #{tpu_custom_call.1} parent=0
    _
  %s12 = ssub.s32 1, %s10
  %s13 = scalar_select 0, %s12, %s10
  $region1: #{tpu_custom_call.1} parent=0
    #allocation2 [shape = 'u8[4096]{0}', space=vmem, size = 0x1000, scoped, tag = 'input window, operand 0, single buffered']
    #allocation3 [shape = 's32[1]{0}', space=sflag, size = 0x4, scoped, tag = 'scoped memory for tpu_custom_call.1']
    #allocation4 [shape = 's32[1]{0}', space=sflag, size = 0x4, scoped, tag = 'scoped memory for tpu_custom_call.1']
    #allocation5 [shape = 'u8[32768]{0}', space=vmem, size = 0x8000, scoped, tag = 'input window, operand 1, single buffered']
    #allocation6 [shape = 's32[1]{0}', space=sflag, size = 0x4, scoped, tag = 'scoped memory for tpu_custom_call.1']
    #allocation7 [shape = 'u8[32768]{0}', space=vmem, size = 0x8000, scoped, tag = 'input window, operand 3, single buffered']
    #allocation8 [shape = 'u8[32768]{0}', space=vmem, size = 0x8000, scoped, tag = 'input window, operand 5, single buffered']
    #allocation9 [shape = 's32[1]{0}', space=sflag, size = 0x4, scoped, tag = 'scoped memory for tpu_custom_call.1']
    #allocation10 [shape = 'u8[32768]{0}', space=vmem, size = 0x8000, scoped, tag = 'input window, operand 7, single buffered']
    #allocation11 [shape = 'u8[4096]{0}', space=vmem, size = 0x1000, scoped, tag = 'output window, operand 0, single buffered']
    %14 = vsyncpa [#allocation3], 0
    %15 = vsyncpa [#allocation6], 0
    %16 = vsyncpa [#allocation9], 0
    %17 = vsyncpa [#allocation4], 0
    // Predicated region
    $region2: #{tpu_custom_call.1} parent=1 // pred_check
      _
    $region3: #{tpu_custom_call.1} parent=1 // pred_check_branch
      %19 = sbr.rel (0) target = $region5
    $region4: #{tpu_custom_call.1} parent=1 // pred_region
      %21 = vsyncadd [#allocation3], 0
      %s23 = sshll.u32 %s0, 4
      %s24 = int_to_ptr.hbm [resolvable:$true] %s23
      %s25 = sshll.u32 [#allocation2], 4
      %s26 = int_to_ptr.vmem [resolvable:$true] %s25
      %28 = dma.hbm_to_vmem [thread:$0]  %s24, 128, %s26, [#allocation3]
    $region5: #{tpu_custom_call.1} parent=1 // pred_fallthru
      _
    // Predicated region
    $region6: #{tpu_custom_call.1} parent=1 // pred_check
      _
    $region7: #{tpu_custom_call.1} parent=1 // pred_check_branch
      %30 = sbr.rel (0) target = $region9
    $region8: #{tpu_custom_call.1} parent=1 // pred_region
      %32 = vsyncadd [#allocation6], 0
      %s33 = sshll.u32 %s1, 4
      %s34 = int_to_ptr.hbm [resolvable:$true] %s33
      %s35 = sshll.u32 [#allocation5], 4
      %s36 = int_to_ptr.vmem [resolvable:$true] %s35
      %41 = dma.hbm_to_vmem [thread:$0]  %s34, 1024, %s36, [#allocation6], 64, 64, 4
    $region9: #{tpu_custom_call.1} parent=1 // pred_fallthru
      _
    // Predicated region
    $region10: #{tpu_custom_call.1} parent=1 // pred_check
      _
    $region11: #{tpu_custom_call.1} parent=1 // pred_check_branch
      %43 = sbr.rel (0) target = $region13
    $region12: #{tpu_custom_call.1} parent=1 // pred_region
      _
    $region13: #{tpu_custom_call.1} parent=1 // pred_fallthru
      _
    // Predicated region
    $region14: #{tpu_custom_call.1} parent=1 // pred_check
      _
    $region15: #{tpu_custom_call.1} parent=1 // pred_check_branch
      %45 = sbr.rel (0) target = $region17
    $region16: #{tpu_custom_call.1} parent=1 // pred_region
      %47 = vsyncadd [#allocation6], 0
      %s48 = sshll.u32 %s3, 4
      %s49 = int_to_ptr.hbm [resolvable:$true] %s48
      %s50 = sshll.u32 [#allocation7], 4
      %s51 = int_to_ptr.vmem [resolvable:$true] %s50
      %56 = dma.hbm_to_vmem [thread:$0]  %s49, 1024, %s51, [#allocation6], 64, 64, 4
    $region17: #{tpu_custom_call.1} parent=1 // pred_fallthru
      _
    // Predicated region
    $region18: #{tpu_custom_call.1} parent=1 // pred_check
      _
    $region19: #{tpu_custom_call.1} parent=1 // pred_check_branch
      %58 = sbr.rel (0) target = $region21
    $region20: #{tpu_custom_call.1} parent=1 // pred_region
      _
    $region21: #{tpu_custom_call.1} parent=1 // pred_fallthru
      _
    // Predicated region
    $region22: #{tpu_custom_call.1} parent=1 // pred_check
      _
    $region23: #{tpu_custom_call.1} parent=1 // pred_check_branch
      %60 = sbr.rel (0) target = $region25
    $region24: #{tpu_custom_call.1} parent=1 // pred_region
      %62 = vsyncadd [#allocation9], 0
      %s63 = sshll.u32 %s5, 4
      %s64 = int_to_ptr.hbm [resolvable:$true] %s63
      %s65 = sshll.u32 [#allocation8], 4
      %s66 = int_to_ptr.vmem [resolvable:$true] %s65
      %71 = dma.hbm_to_vmem [thread:$0]  %s64, 1024, %s66, [#allocation9], 64, 64, 4
    $region25: #{tpu_custom_call.1} parent=1 // pred_fallthru
      _
    // Predicated region
    $region26: #{tpu_custom_call.1} parent=1 // pred_check
      _
    $region27: #{tpu_custom_call.1} parent=1 // pred_check_branch
      %73 = sbr.rel (0) target = $region29
    $region28: #{tpu_custom_call.1} parent=1 // pred_region
      _
    $region29: #{tpu_custom_call.1} parent=1 // pred_fallthru
      _
    // Predicated region
    $region30: #{tpu_custom_call.1} parent=1 // pred_check
      _
    $region31: #{tpu_custom_call.1} parent=1 // pred_check_branch
      %75 = sbr.rel (0) target = $region33
    $region32: #{tpu_custom_call.1} parent=1 // pred_region
      %77 = vsyncadd [#allocation9], 0
      %s78 = sshll.u32 %s7, 4
      %s79 = int_to_ptr.hbm [resolvable:$true] %s78
      %s80 = sshll.u32 [#allocation10], 4
      %s81 = int_to_ptr.vmem [resolvable:$true] %s80
      %86 = dma.hbm_to_vmem [thread:$0]  %s79, 1024, %s81, [#allocation9], 64, 64, 4
    $region33: #{tpu_custom_call.1} parent=1 // pred_fallthru
      _
    // Predicated region
    $region34: #{tpu_custom_call.1} parent=1 // pred_check
      _
    $region35: #{tpu_custom_call.1} parent=1 // pred_check_branch
      %88 = sbr.rel (0) target = $region37
    $region36: #{tpu_custom_call.1} parent=1 // pred_region
      _
    $region37: #{tpu_custom_call.1} parent=1 // pred_fallthru
      _
    // Predicated region
    $region38: #{tpu_custom_call.1} parent=1 // pred_check
      _
    $region39: #{tpu_custom_call.1} parent=1 // pred_check_branch
      %90 = sbr.rel (0) target = $region41
    $region40: #{tpu_custom_call.1} parent=1 // pred_region
      %92 = dma.done [#allocation3], 128
    $region41: #{tpu_custom_call.1} parent=1 // pred_fallthru
      _
    // Predicated region
    $region42: #{tpu_custom_call.1} parent=1 // pred_check
      _
    $region43: #{tpu_custom_call.1} parent=1 // pred_check_branch
      %94 = sbr.rel (0) target = $region45
    $region44: #{tpu_custom_call.1} parent=1 // pred_region
      %96 = dma.done [#allocation6], 1024
    $region45: #{tpu_custom_call.1} parent=1 // pred_fallthru
      _
    // Predicated region
    $region46: #{tpu_custom_call.1} parent=1 // pred_check
      _
    $region47: #{tpu_custom_call.1} parent=1 // pred_check_branch
      %98 = sbr.rel (0) target = $region49
    $region48: #{tpu_custom_call.1} parent=1 // pred_region
      %100 = dma.done [#allocation6], 1024
    $region49: #{tpu_custom_call.1} parent=1 // pred_fallthru
      _
    // Predicated region
    $region50: #{tpu_custom_call.1} parent=1 // pred_check
      _
    $region51: #{tpu_custom_call.1} parent=1 // pred_check_branch
      %102 = sbr.rel (0) target = $region53
    $region52: #{tpu_custom_call.1} parent=1 // pred_region
      %104 = dma.done [#allocation9], 1024
    $region53: #{tpu_custom_call.1} parent=1 // pred_fallthru
      _
    // Predicated region
    $region54: #{tpu_custom_call.1} parent=1 // pred_check
      _
    $region55: #{tpu_custom_call.1} parent=1 // pred_check_branch
      %106 = sbr.rel (0) target = $region57
    $region56: #{tpu_custom_call.1} parent=1 // pred_region
      %108 = dma.done [#allocation9], 1024
    $region57: #{tpu_custom_call.1} parent=1 // pred_fallthru
      _
    %v109 = vld [vmem:[#allocation2] sm:$0xff]
    %v110 = vpack.c.bf16 %v109, %v109
    %v111 = vld [vmem:[#allocation5] sm:$0xf]
    %v112 = vld [vmem:[#allocation5 + $0x4] sm:$0xf]
    %v113 = vld [vmem:[#allocation5 + $0x8] sm:$0xf]
    %v114 = vld [vmem:[#allocation5 + $0xc] sm:$0xf]
    %v115 = vld [vmem:[#allocation5 + $0x10] sm:$0xf]
    %v116 = vld [vmem:[#allocation5 + $0x14] sm:$0xf]
    %v117 = vld [vmem:[#allocation5 + $0x18] sm:$0xf]
    %v118 = vld [vmem:[#allocation5 + $0x1c] sm:$0xf]
    %v119 = vld [vmem:[#allocation5 + $0x20] sm:$0xf]
    %v120 = vld [vmem:[#allocation5 + $0x24] sm:$0xf]
    %v121 = vld [vmem:[#allocation5 + $0x28] sm:$0xf]
    %v122 = vld [vmem:[#allocation5 + $0x2c] sm:$0xf]
    %v123 = vld [vmem:[#allocation5 + $0x30] sm:$0xf]
    %v124 = vld [vmem:[#allocation5 + $0x34] sm:$0xf]
    %v125 = vld [vmem:[#allocation5 + $0x38] sm:$0xf]
    %v126 = vld [vmem:[#allocation5 + $0x3c] sm:$0xf]
    %v127 = vld [vmem:[%s2] sm:$0x1]
    %v129 = vperm.slane %v127, 0
    %v147 = vunpack.c.l.b16 %v111
    %v148 = vunpack.c.l.b16 %v112
    %v149 = vunpack.c.l.b16 %v113
    %v150 = vunpack.c.l.b16 %v114
    %v151 = vunpack.c.l.b16 %v115
    %v152 = vunpack.c.l.b16 %v116
    %v153 = vunpack.c.l.b16 %v117
    %v154 = vunpack.c.l.b16 %v118
    %v155 = vunpack.c.l.b16 %v119
    %v156 = vunpack.c.l.b16 %v120
    %v157 = vunpack.c.l.b16 %v121
    %v158 = vunpack.c.l.b16 %v122
    %v159 = vunpack.c.l.b16 %v123
    %v160 = vunpack.c.l.b16 %v124
    %v161 = vunpack.c.l.b16 %v125
    %v162 = vunpack.c.l.b16 %v126
    %v163 = vpack.c.b16 %v148, %v147
    %v164 = vpack.c.b16 %v150, %v149
    %v165 = vpack.c.b16 %v152, %v151
    %v166 = vpack.c.b16 %v154, %v153
    %v167 = vpack.c.b16 %v156, %v155
    %v168 = vpack.c.b16 %v158, %v157
    %v169 = vpack.c.b16 %v160, %v159
    %v170 = vpack.c.b16 %v162, %v161
    %179 = vmatpush.bf16.msra.mxu0 %v170
    %180 = vmatpush.bf16.msra.mxu0 %v169
    %181 = vmatpush.bf16.msra.mxu0 %v168
    %182 = vmatpush.bf16.msra.mxu0 %v167
    %183 = vmatpush.bf16.msra.mxu0 %v166
    %184 = vmatpush.bf16.msra.mxu0 %v165
    %185 = vmatpush.bf16.msra.mxu0 %v164
    %186 = vmatpush.bf16.msra.mxu0 %v163
    %187 = vmatmul.bf16.gmra.mxu0 %v110
    %v188 = vpop.f32.mrf.mxu0
    %v189 = vadd.f32 %v129, %v188
    %v190 = vpop.f32.mrf.mxu0
    %191 = vdwg.mxu0
    %v192 = vmax.f32 %v189, 0.0
    %v193 = vpack.c.bf16 %v192, %v192
    %v194 = vld [vmem:[#allocation7] sm:$0xf]
    %v195 = vld [vmem:[#allocation7 + $0x4] sm:$0xf]
    %v196 = vld [vmem:[#allocation7 + $0x8] sm:$0xf]
    %v197 = vld [vmem:[#allocation7 + $0xc] sm:$0xf]
    %v198 = vld [vmem:[#allocation7 + $0x10] sm:$0xf]
    %v199 = vld [vmem:[#allocation7 + $0x14] sm:$0xf]
    %v200 = vld [vmem:[#allocation7 + $0x18] sm:$0xf]
    %v201 = vld [vmem:[#allocation7 + $0x1c] sm:$0xf]
    %v202 = vld [vmem:[#allocation7 + $0x20] sm:$0xf]
    %v203 = vld [vmem:[#allocation7 + $0x24] sm:$0xf]
    %v204 = vld [vmem:[#allocation7 + $0x28] sm:$0xf]
    %v205 = vld [vmem:[#allocation7 + $0x2c] sm:$0xf]
    %v206 = vld [vmem:[#allocation7 + $0x30] sm:$0xf]
    %v207 = vld [vmem:[#allocation7 + $0x34] sm:$0xf]
    %v208 = vld [vmem:[#allocation7 + $0x38] sm:$0xf]
    %v209 = vld [vmem:[#allocation7 + $0x3c] sm:$0xf]
    %v210 = vld [vmem:[%s4] sm:$0x1]
    %v212 = vperm.slane %v210, 0
    %v230 = vunpack.c.l.b16 %v194
    %v231 = vunpack.c.l.b16 %v195
    %v232 = vunpack.c.l.b16 %v196
    %v233 = vunpack.c.l.b16 %v197
    %v234 = vunpack.c.l.b16 %v198
    %v235 = vunpack.c.l.b16 %v199
    %v236 = vunpack.c.l.b16 %v200
    %v237 = vunpack.c.l.b16 %v201
    %v238 = vunpack.c.l.b16 %v202
    %v239 = vunpack.c.l.b16 %v203
    %v240 = vunpack.c.l.b16 %v204
    %v241 = vunpack.c.l.b16 %v205
    %v242 = vunpack.c.l.b16 %v206
    %v243 = vunpack.c.l.b16 %v207
    %v244 = vunpack.c.l.b16 %v208
    %v245 = vunpack.c.l.b16 %v209
    %v246 = vpack.c.b16 %v231, %v230
    %v247 = vpack.c.b16 %v233, %v232
    %v248 = vpack.c.b16 %v235, %v234
    %v249 = vpack.c.b16 %v237, %v236
    %v250 = vpack.c.b16 %v239, %v238
    %v251 = vpack.c.b16 %v241, %v240
    %v252 = vpack.c.b16 %v243, %v242
    %v253 = vpack.c.b16 %v245, %v244
    %262 = vmatpush.bf16.msra.mxu0 %v253
    %263 = vmatpush.bf16.msra.mxu0 %v252
    %264 = vmatpush.bf16.msra.mxu0 %v251
    %265 = vmatpush.bf16.msra.mxu0 %v250
    %266 = vmatpush.bf16.msra.mxu0 %v249
    %267 = vmatpush.bf16.msra.mxu0 %v248
    %268 = vmatpush.bf16.msra.mxu0 %v247
    %269 = vmatpush.bf16.msra.mxu0 %v246
    %270 = vmatmul.bf16.gmra.mxu0 %v193
    %v271 = vpop.f32.mrf.mxu0
    %v272 = vadd.f32 %v212, %v271
    %v273 = vpop.f32.mrf.mxu0
    %274 = vdwg.mxu0
    %v275 = vmax.f32 %v272, 0.0
    %v276 = vpack.c.bf16 %v275, %v275
    %v277 = vld [vmem:[#allocation8] sm:$0xf]
    %v278 = vld [vmem:[#allocation8 + $0x4] sm:$0xf]
    %v279 = vld [vmem:[#allocation8 + $0x8] sm:$0xf]
    %v280 = vld [vmem:[#allocation8 + $0xc] sm:$0xf]
    %v281 = vld [vmem:[#allocation8 + $0x10] sm:$0xf]
    %v282 = vld [vmem:[#allocation8 + $0x14] sm:$0xf]
    %v283 = vld [vmem:[#allocation8 + $0x18] sm:$0xf]
    %v284 = vld [vmem:[#allocation8 + $0x1c] sm:$0xf]
    %v285 = vld [vmem:[#allocation8 + $0x20] sm:$0xf]
    %v286 = vld [vmem:[#allocation8 + $0x24] sm:$0xf]
    %v287 = vld [vmem:[#allocation8 + $0x28] sm:$0xf]
    %v288 = vld [vmem:[#allocation8 + $0x2c] sm:$0xf]
    %v289 = vld [vmem:[#allocation8 + $0x30] sm:$0xf]
    %v290 = vld [vmem:[#allocation8 + $0x34] sm:$0xf]
    %v291 = vld [vmem:[#allocation8 + $0x38] sm:$0xf]
    %v292 = vld [vmem:[#allocation8 + $0x3c] sm:$0xf]
    %v293 = vld [vmem:[%s6] sm:$0x1]
    %v295 = vperm.slane %v293, 0
    %v313 = vunpack.c.l.b16 %v277
    %v314 = vunpack.c.l.b16 %v278
    %v315 = vunpack.c.l.b16 %v279
    %v316 = vunpack.c.l.b16 %v280
    %v317 = vunpack.c.l.b16 %v281
    %v318 = vunpack.c.l.b16 %v282
    %v319 = vunpack.c.l.b16 %v283
    %v320 = vunpack.c.l.b16 %v284
    %v321 = vunpack.c.l.b16 %v285
    %v322 = vunpack.c.l.b16 %v286
    %v323 = vunpack.c.l.b16 %v287
    %v324 = vunpack.c.l.b16 %v288
    %v325 = vunpack.c.l.b16 %v289
    %v326 = vunpack.c.l.b16 %v290
    %v327 = vunpack.c.l.b16 %v291
    %v328 = vunpack.c.l.b16 %v292
    %v329 = vpack.c.b16 %v314, %v313
    %v330 = vpack.c.b16 %v316, %v315
    %v331 = vpack.c.b16 %v318, %v317
    %v332 = vpack.c.b16 %v320, %v319
    %v333 = vpack.c.b16 %v322, %v321
    %v334 = vpack.c.b16 %v324, %v323
    %v335 = vpack.c.b16 %v326, %v325
    %v336 = vpack.c.b16 %v328, %v327
    %345 = vmatpush.bf16.msra.mxu0 %v336
    %346 = vmatpush.bf16.msra.mxu0 %v335
    %347 = vmatpush.bf16.msra.mxu0 %v334
    %348 = vmatpush.bf16.msra.mxu0 %v333
    %349 = vmatpush.bf16.msra.mxu0 %v332
    %350 = vmatpush.bf16.msra.mxu0 %v331
    %351 = vmatpush.bf16.msra.mxu0 %v330
    %352 = vmatpush.bf16.msra.mxu0 %v329
    %353 = vmatmul.bf16.gmra.mxu0 %v276
    %v354 = vpop.f32.mrf.mxu0
    %v355 = vadd.f32 %v295, %v354
    %v356 = vpop.f32.mrf.mxu0
    %357 = vdwg.mxu0
    %v358 = vmax.f32 %v355, 0.0
    %v359 = vpack.c.bf16 %v358, %v358
    %v360 = vld [vmem:[#allocation10] sm:$0xf]
    %v361 = vld [vmem:[#allocation10 + $0x4] sm:$0xf]
    %v362 = vld [vmem:[#allocation10 + $0x8] sm:$0xf]
    %v363 = vld [vmem:[#allocation10 + $0xc] sm:$0xf]
    %v364 = vld [vmem:[#allocation10 + $0x10] sm:$0xf]
    %v365 = vld [vmem:[#allocation10 + $0x14] sm:$0xf]
    %v366 = vld [vmem:[#allocation10 + $0x18] sm:$0xf]
    %v367 = vld [vmem:[#allocation10 + $0x1c] sm:$0xf]
    %v368 = vld [vmem:[#allocation10 + $0x20] sm:$0xf]
    %v369 = vld [vmem:[#allocation10 + $0x24] sm:$0xf]
    %v370 = vld [vmem:[#allocation10 + $0x28] sm:$0xf]
    %v371 = vld [vmem:[#allocation10 + $0x2c] sm:$0xf]
    %v372 = vld [vmem:[#allocation10 + $0x30] sm:$0xf]
    %v373 = vld [vmem:[#allocation10 + $0x34] sm:$0xf]
    %v374 = vld [vmem:[#allocation10 + $0x38] sm:$0xf]
    %v375 = vld [vmem:[#allocation10 + $0x3c] sm:$0xf]
    %v376 = vld [vmem:[%s8] sm:$0x1]
    %v378 = vperm.slane %v376, 0
    %v396 = vunpack.c.l.b16 %v360
    %v397 = vunpack.c.l.b16 %v361
    %v398 = vunpack.c.l.b16 %v362
    %v399 = vunpack.c.l.b16 %v363
    %v400 = vunpack.c.l.b16 %v364
    %v401 = vunpack.c.l.b16 %v365
    %v402 = vunpack.c.l.b16 %v366
    %v403 = vunpack.c.l.b16 %v367
    %v404 = vunpack.c.l.b16 %v368
    %v405 = vunpack.c.l.b16 %v369
    %v406 = vunpack.c.l.b16 %v370
    %v407 = vunpack.c.l.b16 %v371
    %v408 = vunpack.c.l.b16 %v372
    %v409 = vunpack.c.l.b16 %v373
    %v410 = vunpack.c.l.b16 %v374
    %v411 = vunpack.c.l.b16 %v375
    %v412 = vpack.c.b16 %v397, %v396
    %v413 = vpack.c.b16 %v399, %v398
    %v414 = vpack.c.b16 %v401, %v400
    %v415 = vpack.c.b16 %v403, %v402
    %v416 = vpack.c.b16 %v405, %v404
    %v417 = vpack.c.b16 %v407, %v406
    %v418 = vpack.c.b16 %v409, %v408
    %v419 = vpack.c.b16 %v411, %v410
    %428 = vmatpush.bf16.msra.mxu0 %v419
    %429 = vmatpush.bf16.msra.mxu0 %v418
    %430 = vmatpush.bf16.msra.mxu0 %v417
    %431 = vmatpush.bf16.msra.mxu0 %v416
    %432 = vmatpush.bf16.msra.mxu0 %v415
    %433 = vmatpush.bf16.msra.mxu0 %v414
    %434 = vmatpush.bf16.msra.mxu0 %v413
    %435 = vmatpush.bf16.msra.mxu0 %v412
    %436 = vmatmul.bf16.gmra.mxu0 %v359
    %v437 = vpop.f32.mrf.mxu0
    %v438 = vadd.f32 %v378, %v437
    %v439 = vpop.f32.mrf.mxu0
    %440 = vdwg.mxu0
    %441 = vst [vmem:[#allocation11] sm:$0xff] %v438
    // Predicated region
    $region58: #{tpu_custom_call.1} parent=1 // pred_check
      _
    $region59: #{tpu_custom_call.1} parent=1 // pred_check_branch
      %443 = sbr.rel (0) target = $region61
    $region60: #{tpu_custom_call.1} parent=1 // pred_region
      %445 = vsyncadd [#allocation4], 0
      %s447 = sshll.u32 [#allocation11], 4
      %s448 = int_to_ptr.vmem [resolvable:$true] %s447
      %s449 = sshll.u32 %s9, 4
      %s450 = int_to_ptr.hbm [resolvable:$true] %s449
      %452 = dma.vmem_to_hbm [thread:$0]  %s448, 128, %s450, [#allocation4]
    $region61: #{tpu_custom_call.1} parent=1 // pred_fallthru
      _
    // Predicated region
    $region62: #{tpu_custom_call.1} parent=1 // pred_check
      _
    $region63: #{tpu_custom_call.1} parent=1 // pred_check_branch
      %454 = sbr.rel (0) target = $region65
    $region64: #{tpu_custom_call.1} parent=1 // pred_region
      %456 = dma.done [#allocation4], 128
    $region65: #{tpu_custom_call.1} parent=1 // pred_fallthru
      _
    %457 = vsyncpa [#allocation3], 1
    %458 = vsyncpa [#allocation6], 1
    %459 = vsyncpa [#allocation9], 1
    %460 = vsyncpa [#allocation4], 1

</llo_original>
